<compile_context>
chip_gen: v7x
topology: tpu7x:2x2x1
jax: 0.10.0
libtpu: 0.0.40
codegen_flags: <defaults>
</compile_context>

<pallas_src>
import functools
import math

import jax
import jax.numpy as jnp
from jax.experimental import pallas as pl
from jax.experimental.pallas import tpu as pltpu


def _round_up(x, m):
    return (x + m - 1) // m * m


def _vmem_budget_bytes():
    """Scoped-VMEM budget: ~70% of physical, clamped to [32, 96] MiB.

    v5e/v6e (128 MiB physical) -> ~90 MiB; v7x (64 MiB) -> ~45 MiB.
    Falls back to the v7x-safe value if the query is unavailable."""
    cap = 64 * 1024 * 1024
    try:
        cap = int(pltpu.get_tpu_info().vmem_capacity_bytes)
    except Exception:
        pass
    return max(32 * 1024 * 1024, min(96 * 1024 * 1024, int(cap * 0.70)))


# --------------------------------------------------------------------------
# Stage 1: L2-normalize rows, fold 1/sqrt(T), emit MXU operands + positive
#          logit pos_i = <xn_i, xn_pair(i)> / T  (f32 path, O(N*D)).
# --------------------------------------------------------------------------
def _prep_kernel(x_ref, xp_ref, xs_ref, pos_ref, *, inv_sqrt_temp):
    x = x_ref[...].astype(jnp.float32)     # [blk1, D]
    xp = xp_ref[...].astype(jnp.float32)   # [blk1, D] positive partners

    # F.normalize(x, dim=1): x / max(||x||, 1e-12)  (rsqrt -> EUP slot).
    inv_n = jax.lax.rsqrt(jnp.maximum(jnp.sum(x * x, axis=1, keepdims=True), 1e-24))
    inv_p = jax.lax.rsqrt(jnp.maximum(jnp.sum(xp * xp, axis=1, keepdims=True), 1e-24))

    scale = jnp.float32(inv_sqrt_temp)
    xs = x * (inv_n * scale)                # xs @ xs.T == (xn @ xn.T) / T
    xps = xp * (inv_p * scale)

    xs_ref[...] = xs.astype(xs_ref.dtype)
    pos_ref[...] = jnp.sum(xs * xps, axis=1, keepdims=True)


# --------------------------------------------------------------------------
# Stage 2: flash-style online log-sum-exp over [br, bc] similarity blocks.
# --------------------------------------------------------------------------
def _flash_kernel(xs_row_ref, xs_col_ref, pos_ref, loss_ref, m_sc, l_sc,
                  *, br, bc, n_valid, pad_cols):
    i = pl.program_id(0)   # row block  ("parallel")
    j = pl.program_id(1)   # col block  (reduction, "arbitrary", last)

    @pl.when(j == 0)
    def _init():
        m_sc[...] = jnp.full((br, 1), -jnp.inf, jnp.float32)
        l_sc[...] = jnp.zeros((br, 1), jnp.float32)

    # [br, bc] similarity block on the MXU (f32 accumulate); temperature is
    # already folded into the operands by stage 1.
    s = jax.lax.dot_general(
        xs_row_ref[...], xs_col_ref[...],
        (((1,), (1,)), ((), ())),
        preferred_element_type=jnp.float32)

    def _lse_update(vals):
        m_prev = m_sc[...]
        m_new = jnp.maximum(m_prev, jnp.max(vals, axis=1, keepdims=True))
        alpha = jnp.exp(m_prev - m_new)
        p = jnp.exp(vals - m_new)
        l_sc[...] = alpha * l_sc[...] + jnp.sum(p, axis=1, keepdims=True)
        m_sc[...] = m_new

    # --- mask gating: only blocks touched by the diagonal (or the padded
    #     column tail) pay any iota/compare/where VPU work -----------------
    row0 = i * br
    col0 = j * bc
    needs_diag = jnp.logical_and(row0 < col0 + bc, col0 < row0 + br)
    if pad_cols:  # Python-static: only emitted when N actually needs padding
        needs_mask = jnp.logical_or(needs_diag, j == pl.num_programs(1) - 1)
    else:
        needs_mask = needs_diag

    @pl.when(jnp.logical_not(needs_mask))
    def _fast():
        _lse_update(s)

    @pl.when(needs_mask)
    def _masked():
        r = jax.lax.broadcasted_iota(jnp.int32, (br, bc), 0)
        c = jax.lax.broadcasted_iota(jnp.int32, (br, bc), 1)
        mask = (r - c) == (col0 - row0)            # global_row == global_col
        if pad_cols:
            mask = jnp.logical_or(mask, c >= n_valid - col0)   # padded cols
        _lse_update(jnp.where(mask, -jnp.inf, s))

    @pl.when(j == pl.num_programs(1) - 1)
    def _finalize():
        lse = m_sc[...] + jnp.log(l_sc[...])
        loss_ref[...] = lse - pos_ref[...]
    # TODO(synk): per-row losses stay lane-sparse ((br, 1) blocks); they are
    # written once per row block so lane-dense packing is a minor cleanup.


def infonce_loss(features, temperature=0.5):
    """features: [2*batch, feature_dim] -> scalar InfoNCE loss."""
    n, d = features.shape
    assert n % 2 == 0, "features must stack two augmented views: [2*B, D]"
    b = n // 2

    # bf16 MXU operands are comfortably accurate at SimCLR-typical T >= ~0.2;
    # smaller temperatures blow up |logits|, so fall back to f32 operands.
    mxu_dtype = jnp.bfloat16 if float(temperature) >= 0.2 else jnp.float32
    esize = jnp.dtype(mxu_dtype).itemsize

    d_pad = _round_up(d, 128)          # lane-align K for full MXU passes
    budget = _vmem_budget_bytes()

    # ---- Stage-2 tile selection --------------------------------------------
    if n <= 256 or (n <= 512 and d_pad <= 256):
        br = bc = _round_up(n, 16)     # single similarity block
    else:
        # Fatter col tile at small D amortizes the ~0.35us per-grid-step cost.
        bc = 512 if d_pad <= 256 else 256
        while bc > 64 and 2 * (bc + bc) * d_pad * esize > budget:
            bc //= 2                   # very large D: shrink to fit VMEM
        br = bc
        # Larger row (query) tile: col streaming HBM traffic ~ N^2*D/br, so
        # 2x rows halves it (v6e roofline); keep >= 2 row blocks for v7x
        # megacore and stay inside the VMEM budget.
        if n >= 4 * bc and 2 * (2 * bc + bc) * d_pad * esize <= budget:
            br = 2 * bc
    n_pad = _round_up(n, br)           # br is a multiple of bc
    g_row = n_pad // br
    g_col = n_pad // bc

    # ---- Stage-1 row tile (normalization pass) ------------------------------
    # Footprint/row: 2 f32 inputs double-buffered (16B) + MXU-dtype output
    # double-buffered (2*esize B); shrink the row tile for very large D
    # (keeps v7x's 64 MiB part out of spill/OOM territory).
    row_bytes1 = 16 + 2 * esize
    blk1 = min(256, n_pad)
    while blk1 > 16 and blk1 * d_pad * row_bytes1 > budget:
        blk1 //= 2
    while blk1 > 16 and n_pad % blk1 != 0:
        blk1 //= 2
    if n_pad % blk1 != 0:
        blk1 = n_pad
    g1 = n_pad // blk1

    x = features.astype(jnp.float32)
    if n_pad > n or d_pad > d:
        x = jnp.pad(x, ((0, n_pad - n), (0, d_pad - d)))

    # Positive partner of row i is row (i + b) mod n.  When the stage-1 row
    # tile divides b we fetch the partner via an index_map shift on the SAME
    # array (no jnp.concatenate HBM pass); otherwise (tiny/awkward N) we fall
    # back to materializing the rolled copy, which is cheap there.
    use_shift = (b % blk1 == 0)
    if use_shift:
        shift = b // blk1
        nvb = n // blk1                      # number of valid row blocks
        partner_in = x
        partner_map = lambda i: ((i + shift) % nvb, 0)
    else:
        x_pair = jnp.concatenate([features[b:], features[:b]], axis=0)
        x_pair = x_pair.astype(jnp.float32)
        if n_pad > n or d_pad > d:
            x_pair = jnp.pad(x_pair, ((0, n_pad - n), (0, d_pad - d)))
        partner_in = x_pair
        partner_map = lambda i: (i, 0)

    inv_sqrt_temp = 1.0 / math.sqrt(float(temperature))

    # --- Stage 1: normalize + temperature fold + positive logits ------------
    xs, pos = pl.pallas_call(
        functools.partial(_prep_kernel, inv_sqrt_temp=inv_sqrt_temp),
        out_shape=(jax.ShapeDtypeStruct((n_pad, d_pad), mxu_dtype),
                   jax.ShapeDtypeStruct((n_pad, 1), jnp.float32)),
        grid_spec=pltpu.PrefetchScalarGridSpec(
            num_scalar_prefetch=0,
            grid=(g1,),
            in_specs=[pl.BlockSpec((blk1, d_pad), lambda i: (i, 0)),
                      pl.BlockSpec((blk1, d_pad), partner_map)],
            out_specs=[pl.BlockSpec((blk1, d_pad), lambda i: (i, 0)),
                       pl.BlockSpec((blk1, 1), lambda i: (i, 0))],
        ),
        compiler_params=pltpu.CompilerParams(
            dimension_semantics=("parallel",),
            vmem_limit_bytes=budget),
    )(x, partner_in)

    # --- Stage 2: flash-style tiled similarity + online logsumexp -----------
    per_row = pl.pallas_call(
        functools.partial(_flash_kernel, br=br, bc=bc, n_valid=n,
                          pad_cols=(n_pad > n)),
        out_shape=jax.ShapeDtypeStruct((n_pad, 1), jnp.float32),
        grid_spec=pltpu.PrefetchScalarGridSpec(
            num_scalar_prefetch=0,
            grid=(g_row, g_col),
            in_specs=[pl.BlockSpec((br, d_pad), lambda i, j: (i, 0)),   # rows
                      pl.BlockSpec((bc, d_pad), lambda i, j: (j, 0)),   # cols
                      pl.BlockSpec((br, 1), lambda i, j: (i, 0))],      # pos
            out_specs=pl.BlockSpec((br, 1), lambda i, j: (i, 0)),
            scratch_shapes=[pltpu.VMEM((br, 1), jnp.float32),   # running max
                            pltpu.VMEM((br, 1), jnp.float32)],  # running sum
        ),
        compiler_params=pltpu.CompilerParams(
            dimension_semantics=("parallel", "arbitrary"),
            vmem_limit_bytes=budget),
    )(xs, xs, pos)

    # Mean over the valid rows (padded rows excluded).
    return jnp.sum(per_row[:n, 0]) / jnp.float32(n)


def _infonce_loss_ref(features, temperature=0.5):
    """Pure-JAX reference matching the PyTorch module semantics."""
    x = features.astype(jnp.float32)
    norm = jnp.maximum(jnp.linalg.norm(x, axis=1, keepdims=True), 1e-12)
    xn = x / norm
    sim = (xn @ xn.T) / temperature
    n = x.shape[0]
    b = n // 2
    labels = jnp.concatenate([jnp.arange(b) + b, jnp.arange(b)])
    sim = jnp.where(jnp.eye(n, dtype=bool), -jnp.inf, sim)
    lse = jax.scipy.special.logsumexp(sim, axis=1)
    pos = sim[jnp.arange(n), labels]
    return jnp.mean(lse - pos)


if __name__ == "__main__":
    # Small config matching the module: two augmented views stacked on dim 0.
    batch_size = 4
    feature_dim = 32
    key = jax.random.PRNGKey(0)
    features = jax.random.normal(key, (2 * batch_size, feature_dim), jnp.float32)

    loss = infonce_loss(features, temperature=0.5)
    jax.block_until_ready(loss)
    ref = _infonce_loss_ref(features, temperature=0.5)
    # bf16 MXU operands (f32 accumulate) => allow small drift vs the f32 ref.
    assert jnp.allclose(loss, ref, atol=3e-2, rtol=3e-2), (loss, ref)

    # Tiled path: square 256x256 blocks, grid (2, 2), shifted-partner stage 1.
    feats2 = jax.random.normal(jax.random.PRNGKey(1), (512, 384), jnp.float32)
    loss2 = infonce_loss(feats2, temperature=0.5)
    jax.block_until_ready(loss2)
    ref2 = _infonce_loss_ref(feats2, temperature=0.5)
    assert jnp.allclose(loss2, ref2, atol=3e-2, rtol=3e-2), (loss2, ref2)

    # Rectangular path: 512-row x 256-col blocks, grid (2, 4), mask gating on
    # exactly two col blocks per row block.
    feats3 = jax.random.normal(jax.random.PRNGKey(2), (1024, 384), jnp.float32)
    loss3 = infonce_loss(feats3, temperature=0.5)
    jax.block_until_ready(loss3)
    ref3 = _infonce_loss_ref(feats3, temperature=0.5)
    assert jnp.allclose(loss3, ref3, atol=3e-2, rtol=3e-2), (loss3, ref3)

    print("KERNEL_OK")
</pallas_src>

<mosaic_0001>
module attributes {stable_mosaic.version = 11 : i64} {
  func.func @_prep_kernel(%arg0: i32, %arg1: memref<16x128xf32, #tpu.memory_space<vmem>>, %arg2: memref<16x128xf32, #tpu.memory_space<vmem>>, %arg3: memref<16x128xbf16, #tpu.memory_space<vmem>>, %arg4: memref<16x1xf32, #tpu.memory_space<vmem>>) attributes {dimension_semantics = [#tpu.dimension_semantics<parallel>], iteration_bounds = array<i64: 1>, scalar_prefetch = 0 : i64, scratch_operands = 0 : i64, tpu.core_type = #tpu.core_type<tc>, window_params = [{transform_indices = @transform_0, window_bounds = array<i64: 16, 128>}, {transform_indices = @transform_1, window_bounds = array<i64: 16, 128>}, {transform_indices = @transform_2, window_bounds = array<i64: 16, 128>}, {transform_indices = @transform_3, window_bounds = array<i64: 16, 1>}]} {
    %c0 = arith.constant 0 : index
    %c0_0 = arith.constant 0 : index
    %0 = vector.load %arg1[%c0, %c0_0] : memref<16x128xf32, #tpu.memory_space<vmem>>, vector<16x128xf32>
    %c0_1 = arith.constant 0 : index
    %c0_2 = arith.constant 0 : index
    %1 = vector.load %arg2[%c0_1, %c0_2] : memref<16x128xf32, #tpu.memory_space<vmem>>, vector<16x128xf32>
    %2 = arith.mulf %0, %0 : vector<16x128xf32>
    %cst = arith.constant dense<0.000000e+00> : vector<16xf32>
    %3 = vector.multi_reduction <add>, %2, %cst [1] : vector<16x128xf32> to vector<16xf32>
    %4 = vector.shape_cast %3 : vector<16xf32> to vector<16x1xf32>
    %cst_3 = arith.constant 1.000000e-24 : f32
    %5 = vector.broadcast %cst_3 : f32 to vector<16x1xf32>
    %6 = arith.maximumf %4, %5 : vector<16x1xf32>
    %7 = math.rsqrt %6 : vector<16x1xf32>
    %8 = arith.mulf %1, %1 : vector<16x128xf32>
    %cst_4 = arith.constant dense<0.000000e+00> : vector<16xf32>
    %9 = vector.multi_reduction <add>, %8, %cst_4 [1] : vector<16x128xf32> to vector<16xf32>
    %10 = vector.shape_cast %9 : vector<16xf32> to vector<16x1xf32>
    %cst_5 = arith.constant 1.000000e-24 : f32
    %11 = vector.broadcast %cst_5 : f32 to vector<16x1xf32>
    %12 = arith.maximumf %10, %11 : vector<16x1xf32>
    %13 = math.rsqrt %12 : vector<16x1xf32>
    %cst_6 = arith.constant 1.41421354 : f32
    %14 = vector.broadcast %cst_6 : f32 to vector<16x1xf32>
    %15 = arith.mulf %7, %14 : vector<16x1xf32>
    %16 = vector.broadcast %15 : vector<16x1xf32> to vector<16x128xf32>
    %17 = arith.mulf %0, %16 : vector<16x128xf32>
    %cst_7 = arith.constant 1.41421354 : f32
    %18 = vector.broadcast %cst_7 : f32 to vector<16x1xf32>
    %19 = arith.mulf %13, %18 : vector<16x1xf32>
    %20 = vector.broadcast %19 : vector<16x1xf32> to vector<16x128xf32>
    %21 = arith.mulf %1, %20 : vector<16x128xf32>
    %22 = arith.truncf %17 : vector<16x128xf32> to vector<16x128xbf16>
    %c0_8 = arith.constant 0 : index
    %c0_9 = arith.constant 0 : index
    %23 = vector.load %arg3[%c0_8, %c0_9] : memref<16x128xbf16, #tpu.memory_space<vmem>>, vector<16x128xbf16>
    tpu.vector_store %arg3[%c0_8, %c0_9], %22 {strides = array<i32>} : memref<16x128xbf16, #tpu.memory_space<vmem>>, vector<16x128xbf16>,
    %24 = arith.mulf %17, %21 : vector<16x128xf32>
    %cst_10 = arith.constant dense<0.000000e+00> : vector<16xf32>
    %25 = vector.multi_reduction <add>, %24, %cst_10 [1] : vector<16x128xf32> to vector<16xf32>
    %26 = vector.shape_cast %25 : vector<16xf32> to vector<16x1xf32>
    %c0_11 = arith.constant 0 : index
    %c0_12 = arith.constant 0 : index
    %27 = vector.load %arg4[%c0_11, %c0_12] : memref<16x1xf32, #tpu.memory_space<vmem>>, vector<16x1xf32>
    tpu.vector_store %arg4[%c0_11, %c0_12], %26 {strides = array<i32>} : memref<16x1xf32, #tpu.memory_space<vmem>>, vector<16x1xf32>,
    return
  }
  func.func @transform_0(%arg0: i32) -> (i32, i32) {
    %c0_i32 = arith.constant 0 : i32
    %c0_i32_0 = arith.constant 0 : i32
    return %arg0, %c0_i32 : i32, i32
  }
  func.func @transform_1(%arg0: i32) -> (i32, i32) {
    %c0_i32 = arith.constant 0 : i32
    %c0_i32_0 = arith.constant 0 : i32
    return %arg0, %c0_i32 : i32, i32
  }
  func.func @transform_2(%arg0: i32) -> (i32, i32) {
    %c0_i32 = arith.constant 0 : i32
    %c0_i32_0 = arith.constant 0 : i32
    return %arg0, %c0_i32 : i32, i32
  }
  func.func @transform_3(%arg0: i32) -> (i32, i32) {
    %c0_i32 = arith.constant 0 : i32
    %c0_i32_0 = arith.constant 0 : i32
    return %arg0, %c0_i32 : i32, i32
  }
}

</mosaic_0001>

<llo_original>
// kernel: tpu_custom_call.1
$region0: #{tpu_custom_call.1}
  #allocation0 [shape = 'u32[]', space=smem, size = 0x4, offset = 0x4, fixed_abs, tag = 'smem constant byte address 0x4 - core index']
  #allocation1 [shape = 'u32[144,128]{1,0:T(1,128)}', space=vmem, size = 0x12000, scoped, tag = 'internal scratch']
  %s0 = inlined_call_operand.hbm [shape: f32[16,128], index: 0, kind: input, shape index: {}]
  %s1 = inlined_call_operand.hbm [shape: f32[16,128], index: 1, kind: input, shape index: {}]
  %s2 = inlined_call_operand.hbm [shape: bf16[16,128], index: 2, kind: output, shape index: {0}]
  %s3 = inlined_call_operand.vmem [shape: f32[16,1], index: 3, kind: output, shape index: {1}]
  %4 = xla_tuple %s2, %s3
  %s5 = sld [smem:[#allocation0]]
  $region34: #{tpu_custom_call.1} parent=0
    _
  %s7 = ssub.s32 1, %s5
  %s8 = scalar_select 0, %s7, %s5
  $region1: #{tpu_custom_call.1} parent=0
    #allocation2 [shape = 'u8[8192]{0}', space=vmem, size = 0x2000, scoped, tag = 'input window, operand 0, single buffered']
    #allocation3 [shape = 's32[1]{0}', space=sflag, size = 0x4, scoped, tag = 'scoped memory for tpu_custom_call.1']
    #allocation4 [shape = 's32[1]{0}', space=sflag, size = 0x4, scoped, tag = 'scoped memory for tpu_custom_call.1']
    #allocation5 [shape = 'u8[8192]{0}', space=vmem, size = 0x2000, scoped, tag = 'input window, operand 1, single buffered']
    #allocation6 [shape = 's32[1]{0}', space=sflag, size = 0x4, scoped, tag = 'scoped memory for tpu_custom_call.1']
    #allocation7 [shape = 'u8[4096]{0}', space=vmem, size = 0x1000, scoped, tag = 'output window, operand 0, single buffered']
    %9 = vsyncpa [#allocation3], 0
    %10 = vsyncpa [#allocation6], 0
    %11 = vsyncpa [#allocation4], 0
    // Predicated region
    $region2: #{tpu_custom_call.1} parent=1 // pred_check
      _
    $region3: #{tpu_custom_call.1} parent=1 // pred_check_branch
      %13 = sbr.rel (0) target = $region5
    $region4: #{tpu_custom_call.1} parent=1 // pred_region
      %s15 = ssub.s32 256, 256
      %16 = vsyncadd [#allocation3], %s15
      %s17 = sshll.u32 [#allocation2], 4
      %s18 = int_to_ptr.vmem [resolvable:$true] %s17
      %23 = dma.hbm_to_vmem [thread:$0]  %s0, 256, %s18, [#allocation3], 128, 128, 8
    $region5: #{tpu_custom_call.1} parent=1 // pred_fallthru
      _
    // Predicated region
    $region6: #{tpu_custom_call.1} parent=1 // pred_check
      _
    $region7: #{tpu_custom_call.1} parent=1 // pred_check_branch
      %25 = sbr.rel (0) target = $region9
    $region8: #{tpu_custom_call.1} parent=1 // pred_region
      %s27 = ssub.s32 256, 256
      %28 = vsyncadd [#allocation6], %s27
      %s29 = sshll.u32 [#allocation5], 4
      %s30 = int_to_ptr.vmem [resolvable:$true] %s29
      %35 = dma.hbm_to_vmem [thread:$0]  %s1, 256, %s30, [#allocation6], 128, 128, 8
    $region9: #{tpu_custom_call.1} parent=1 // pred_fallthru
      _
    // Predicated region
    $region10: #{tpu_custom_call.1} parent=1 // pred_check
      _
    $region11: #{tpu_custom_call.1} parent=1 // pred_check_branch
      %37 = sbr.rel (0) target = $region13
    $region12: #{tpu_custom_call.1} parent=1 // pred_region
      %38 = dma.done [#allocation3], 256
    $region13: #{tpu_custom_call.1} parent=1 // pred_fallthru
      _
    // Predicated region
    $region14: #{tpu_custom_call.1} parent=1 // pred_check
      _
    $region15: #{tpu_custom_call.1} parent=1 // pred_check_branch
      %40 = sbr.rel (0) target = $region17
    $region16: #{tpu_custom_call.1} parent=1 // pred_region
      %41 = dma.done [#allocation6], 256
    $region17: #{tpu_custom_call.1} parent=1 // pred_fallthru
      _
    %v42 = vld [vmem:[#allocation2] sm:$0xff]
    %v43 = vld [vmem:[#allocation2 + $0x8] sm:$0xff]
    %v44 = vld [vmem:[#allocation5] sm:$0xff]
    %v45 = vld [vmem:[#allocation5 + $0x8] sm:$0xff]
    %v46 = vmul.f32 %v42, %v42
    %v47 = vmul.f32 %v43, %v43
    %48 = vadd.xlane.f32.xlu0 %v46
    %v49 = vpop.xlane.xlu0 %48
    %50 = vadd.xlane.f32.xlu0 %v47
    %v51 = vpop.xlane.xlu0 %50
    %v52 = vmax.f32 %v49, 1e-24
    %v53 = vmax.f32 %v51, 1e-24
    %v54 = vrsqrt.pop %v52
    %v55 = vrsqrt.pop %v53
    %v56 = vmul.f32 %v44, %v44
    %v57 = vmul.f32 %v45, %v45
    %58 = vadd.xlane.f32.xlu0 %v56
    %v59 = vpop.xlane.xlu0 %58
    %60 = vadd.xlane.f32.xlu0 %v57
    %v61 = vpop.xlane.xlu0 %60
    %v62 = vmax.f32 %v59, 1e-24
    %v63 = vmax.f32 %v61, 1e-24
    %v64 = vrsqrt.pop %v62
    %v65 = vrsqrt.pop %v63
    %v66 = vmul.f32 %v54, 1.4142135
    %v67 = vmul.f32 %v55, 1.4142135
    %v68 = vmul.f32 %v42, %v66
    %v69 = vmul.f32 %v43, %v67
    %v70 = vmul.f32 %v64, 1.4142135
    %v71 = vmul.f32 %v65, 1.4142135
    %v72 = vmul.f32 %v44, %v70
    %v73 = vmul.f32 %v45, %v71
    %v74 = vpack.c.bf16 %v69, %v68
    %v76 = vunpack.c.l.b16 %v74
    %v77 = vunpack.c.h.b16 %v74
    %v78 = vpack.c.b16 %v76, %v76
    %v79 = vpack.c.b16 %v77, %v77
    %82 = vst [vmem:[#allocation7] sm:$0xf] %v78
    %83 = vst [vmem:[#allocation7 + $0x4] sm:$0xf] %v79
    %v84 = vmul.f32 %v68, %v72
    %v85 = vmul.f32 %v69, %v73
    %86 = vadd.xlane.f32.xlu0 %v84
    %v87 = vpop.xlane.xlu0 %86
    %88 = vadd.xlane.f32.xlu0 %v85
    %v89 = vpop.xlane.xlu0 %88
    %vm90 = vcmask 7168
    %91 = vst.msk [vmem:[%s3] sm:$0xff] %vm90, %v87
    %92 = vst.msk [vmem:[%s3 + $0x8] sm:$0xff] %vm90, %v89
    // Predicated region
    $region18: #{tpu_custom_call.1} parent=1 // pred_check
      _
    $region19: #{tpu_custom_call.1} parent=1 // pred_check_branch
      %94 = sbr.rel (0) target = $region21
    $region20: #{tpu_custom_call.1} parent=1 // pred_region
      %s96 = ssub.s32 128, 128
      %97 = vsyncadd [#allocation4], %s96
      %s98 = sshll.u32 [#allocation7], 4
      %s99 = int_to_ptr.vmem [resolvable:$true] %s98
      %104 = dma.vmem_to_hbm [thread:$0]  %s99, 128, %s2, [#allocation4], 64, 64, 4
    $region21: #{tpu_custom_call.1} parent=1 // pred_fallthru
      _
    // Predicated region
    $region22: #{tpu_custom_call.1} parent=1 // pred_check
      _
    $region23: #{tpu_custom_call.1} parent=1 // pred_check_branch
      %106 = sbr.rel (0) target = $region25
    $region24: #{tpu_custom_call.1} parent=1 // pred_region
      _
    $region25: #{tpu_custom_call.1} parent=1 // pred_fallthru
      _
    // Predicated region
    $region26: #{tpu_custom_call.1} parent=1 // pred_check
      _
    $region27: #{tpu_custom_call.1} parent=1 // pred_check_branch
      %108 = sbr.rel (0) target = $region29
    $region28: #{tpu_custom_call.1} parent=1 // pred_region
      %109 = dma.done [#allocation4], 128
    $region29: #{tpu_custom_call.1} parent=1 // pred_fallthru
      _
    // Predicated region
    $region30: #{tpu_custom_call.1} parent=1 // pred_check
      _
    $region31: #{tpu_custom_call.1} parent=1 // pred_check_branch
      %111 = sbr.rel (0) target = $region33
    $region32: #{tpu_custom_call.1} parent=1 // pred_region
      _
    $region33: #{tpu_custom_call.1} parent=1 // pred_fallthru
      _
    %112 = vsyncpa [#allocation3], 1
    %113 = vsyncpa [#allocation6], 1
    %114 = vsyncpa [#allocation4], 1

</llo_original>
